<compile_context>
chip_gen: v5e
topology: v5e:2x2
jax: 0.10.0
libtpu: 0.0.40
codegen_flags: <defaults>
</compile_context>

<pallas_src>
import jax
import jax.numpy as jnp
from jax.experimental import pallas as pl
from jax.experimental.pallas import tpu as pltpu


# Lane/sublane-aligned dimensions used inside the kernel.
K1_PAD = 896        # 784 -> 7*128  (first matmul reduction dim)
H_PAD = 128         # hidden_size -> 128 lanes
H2 = 256            # second hidden width, already lane-aligned
C_PAD = 128         # 10 classes -> 128 lanes
NUM_CLASSES = 10
NEG_LARGE = -1e30   # fill for padded class lanes -> exp() underflows to 0


def mlp_kernel(x_ref, w1_ref, b1_ref, w2_ref, b2_ref, w3_ref, b3_ref, o_ref):
    # x / weights are bf16 (MXU operands); accumulation and all elementwise
    # math (bias add, ReLU, softmax) stay in f32.
    x = x_ref[...]

    h1 = jnp.dot(x, w1_ref[...], preferred_element_type=jnp.float32) + b1_ref[...]
    h1 = jnp.maximum(h1, 0.0)

    h2 = jnp.dot(h1.astype(jnp.bfloat16), w2_ref[...],
                 preferred_element_type=jnp.float32) + b2_ref[...]
    h2 = jnp.maximum(h2, 0.0)

    logits = jnp.dot(h2.astype(jnp.bfloat16), w3_ref[...],
                     preferred_element_type=jnp.float32) + b3_ref[...]

    # Padded class lanes carry NEG_LARGE from the padded bias, so max/sum are
    # unmasked full-lane reductions and exp() on the pad lanes is exactly 0.
    m = jnp.max(logits, axis=1, keepdims=True)
    e = jnp.exp(logits - m)
    denom = jnp.sum(e, axis=1, keepdims=True)
    o_ref[...] = (e * pl.reciprocal(denom, approx=True)).astype(o_ref.dtype)


def _round_up(v, m):
    return (v + m - 1) // m * m


def prepare_params(params):
    """Zero-pad + cast PyTorch-layout params to the lane-aligned kernel layout."""
    w1, b1, w2, b2, w3, b3 = params
    hidden = w1.shape[1]

    w1p = jnp.zeros((K1_PAD, H_PAD), jnp.float32).at[:784, :hidden].set(w1)
    w1p = w1p.astype(jnp.bfloat16)
    b1p = jnp.zeros((1, H_PAD), jnp.float32).at[:, :hidden].set(b1)

    w2p = jnp.zeros((H_PAD, H2), jnp.float32).at[:hidden, :].set(w2)
    w2p = w2p.astype(jnp.bfloat16)
    b2p = b2.astype(jnp.float32)

    w3p = jnp.zeros((H2, C_PAD), jnp.float32).at[:, :NUM_CLASSES].set(w3)
    w3p = w3p.astype(jnp.bfloat16)
    # Pad class lanes get a huge negative bias so softmax treats them as -inf.
    b3p = jnp.full((1, C_PAD), NEG_LARGE, jnp.float32).at[:, :NUM_CLASSES].set(b3)

    return w1p, b1p, w2p, b2p, w3p, b3p


def net_forward(x_nchw, params, block_rows=None):
    w1p, b1p, w2p, b2p, w3p, b3p = prepare_params(params)

    B = x_nchw.shape[0]
    # Row-tile size: sublane-aligned (8 for the tiny demo batch), capped at 512
    # so the x tile + double buffering stays well inside v7x's 64 MiB VMEM.
    if block_rows is None:
        block_rows = min(512, _round_up(B, 8))
    grid_b = pl.cdiv(B, block_rows)
    B_pad = grid_b * block_rows

    # torch: x.view(-1, 784)  (row-major flatten of C*H*W), then pad rows to
    # the tile size and the reduction dim to 7*128; cast to bf16 MXU operands.
    x2d = x_nchw.reshape(B, 784).astype(jnp.float32)
    x2d = jnp.pad(x2d, ((0, B_pad - B), (0, K1_PAD - 784))).astype(jnp.bfloat16)

    def resident(shape):
        return pl.BlockSpec(shape, lambda i: (0,) * len(shape))

    out_padded = pl.pallas_call(
        mlp_kernel,
        out_shape=jax.ShapeDtypeStruct((B_pad, C_PAD), jnp.float32),
        grid=(grid_b,),
        in_specs=[
            pl.BlockSpec((block_rows, K1_PAD), lambda i: (i, 0)),
            resident(w1p.shape), resident(b1p.shape),
            resident(w2p.shape), resident(b2p.shape),
            resident(w3p.shape), resident(b3p.shape),
        ],
        out_specs=pl.BlockSpec((block_rows, C_PAD), lambda i: (i, 0)),
        compiler_params=pltpu.CompilerParams(
            dimension_semantics=("parallel",)),
    )(x2d, w1p, b1p, w2p, b2p, w3p, b3p)

    return out_padded[:B, :NUM_CLASSES]


def net_reference(x_nchw, params):
    """Pure-JAX f32 reference of the PyTorch forward pass."""
    w1, b1, w2, b2, w3, b3 = params
    x = x_nchw.reshape(x_nchw.shape[0], 784).astype(jnp.float32)
    h1 = jnp.maximum(x @ w1 + b1, 0.0)
    h2 = jnp.maximum(h1 @ w2 + b2, 0.0)
    return jax.nn.softmax(h2 @ w3 + b3, axis=1)


def init_params(key, hidden_size):
    # Deterministic synthetic init (PyTorch-like uniform(-1/sqrt(fan_in), 1/sqrt(fan_in))).
    dims = [(784, hidden_size), (hidden_size, 256), (256, 10)]
    params = []
    keys = jax.random.split(key, 2 * len(dims))
    for i, (fan_in, fan_out) in enumerate(dims):
        bound = 1.0 / jnp.sqrt(float(fan_in))
        w = jax.random.uniform(keys[2 * i], (fan_in, fan_out), jnp.float32, -bound, bound)
        b = jax.random.uniform(keys[2 * i + 1], (1, fan_out), jnp.float32, -bound, bound)
        params += [w, b]
    return tuple(params)


if __name__ == "__main__":
    key = jax.random.PRNGKey(0)
    k_x, k_p = jax.random.split(key)

    hidden_size = 32
    batch = 2
    # MNIST-style NCHW input: (B, 1, 28, 28) -> flattens to (B, 784)
    x = jax.random.normal(k_x, (batch, 1, 28, 28), dtype=jnp.float32)

    params = init_params(k_p, hidden_size)

    out = net_forward(x, params)
    out = jax.block_until_ready(out)

    # sanity: shape, softmax rows ~sum to 1 (approx reciprocal + bf16 operands),
    # and agreement with the pure-JAX f32 reference.
    assert out.shape == (batch, 10)
    assert jnp.allclose(jnp.sum(out, axis=1), 1.0, atol=1e-2)
    ref = net_reference(x, params)
    assert jnp.allclose(out, ref, atol=2e-2), float(jnp.max(jnp.abs(out - ref)))

    print("KERNEL_OK")
</pallas_src>

<mosaic_0001>
module attributes {stable_mosaic.version = 11 : i64} {
  func.func @mlp_kernel(%arg0: i32, %arg1: memref<8x896xbf16, #tpu.memory_space<vmem>>, %arg2: memref<896x128xbf16, #tpu.memory_space<vmem>>, %arg3: memref<1x128xf32, #tpu.memory_space<vmem>>, %arg4: memref<128x256xbf16, #tpu.memory_space<vmem>>, %arg5: memref<1x256xf32, #tpu.memory_space<vmem>>, %arg6: memref<256x128xbf16, #tpu.memory_space<vmem>>, %arg7: memref<1x128xf32, #tpu.memory_space<vmem>>, %arg8: memref<8x128xf32, #tpu.memory_space<vmem>>) attributes {dimension_semantics = [#tpu.dimension_semantics<parallel>], iteration_bounds = array<i64: 1>, scalar_prefetch = 0 : i64, scratch_operands = 0 : i64, tpu.core_type = #tpu.core_type<tc>, window_params = [{transform_indices = @transform_0, window_bounds = array<i64: 8, 896>}, {pipeline_mode = #tpu.pipeline_mode<synchronous>, transform_indices = @transform_1, window_bounds = array<i64: 896, 128>}, {pipeline_mode = #tpu.pipeline_mode<synchronous>, transform_indices = @transform_2, window_bounds = array<i64: 1, 128>}, {pipeline_mode = #tpu.pipeline_mode<synchronous>, transform_indices = @transform_3, window_bounds = array<i64: 128, 256>}, {pipeline_mode = #tpu.pipeline_mode<synchronous>, transform_indices = @transform_4, window_bounds = array<i64: 1, 256>}, {pipeline_mode = #tpu.pipeline_mode<synchronous>, transform_indices = @transform_5, window_bounds = array<i64: 256, 128>}, {pipeline_mode = #tpu.pipeline_mode<synchronous>, transform_indices = @transform_6, window_bounds = array<i64: 1, 128>}, {transform_indices = @transform_7, window_bounds = array<i64: 8, 128>}]} {
    %c0 = arith.constant 0 : index
    %c0_0 = arith.constant 0 : index
    %0 = vector.load %arg1[%c0, %c0_0] : memref<8x896xbf16, #tpu.memory_space<vmem>>, vector<8x896xbf16>
    %c0_1 = arith.constant 0 : index
    %c0_2 = arith.constant 0 : index
    %1 = vector.load %arg2[%c0_1, %c0_2] : memref<896x128xbf16, #tpu.memory_space<vmem>>, vector<896x128xbf16>
    %cst = arith.constant dense<0.000000e+00> : vector<8x128xf32>
    %2 = tpu.matmul %0, %1, %cst {dimension_numbers = #tpu.dot_dimension_numbers<[1], [0], [0], [1], [0, 0, 1, 1], [], []>} : vector<8x896xbf16>, vector<896x128xbf16>, vector<8x128xf32> -> vector<8x128xf32>
    %c0_3 = arith.constant 0 : index
    %c0_4 = arith.constant 0 : index
    %3 = vector.load %arg3[%c0_3, %c0_4] : memref<1x128xf32, #tpu.memory_space<vmem>>, vector<1x128xf32>
    %4 = vector.broadcast %3 : vector<1x128xf32> to vector<8x128xf32>
    %5 = arith.addf %2, %4 : vector<8x128xf32>
    %cst_5 = arith.constant 0.000000e+00 : f32
    %6 = vector.broadcast %cst_5 : f32 to vector<8x128xf32>
    %7 = arith.maximumf %5, %6 : vector<8x128xf32>
    %8 = arith.truncf %7 : vector<8x128xf32> to vector<8x128xbf16>
    %c0_6 = arith.constant 0 : index
    %c0_7 = arith.constant 0 : index
    %9 = vector.load %arg4[%c0_6, %c0_7] : memref<128x256xbf16, #tpu.memory_space<vmem>>, vector<128x256xbf16>
    %cst_8 = arith.constant dense<0.000000e+00> : vector<8x256xf32>
    %10 = tpu.matmul %8, %9, %cst_8 {dimension_numbers = #tpu.dot_dimension_numbers<[1], [0], [0], [1], [0, 0, 1, 1], [], []>} : vector<8x128xbf16>, vector<128x256xbf16>, vector<8x256xf32> -> vector<8x256xf32>
    %c0_9 = arith.constant 0 : index
    %c0_10 = arith.constant 0 : index
    %11 = vector.load %arg5[%c0_9, %c0_10] : memref<1x256xf32, #tpu.memory_space<vmem>>, vector<1x256xf32>
    %12 = vector.broadcast %11 : vector<1x256xf32> to vector<8x256xf32>
    %13 = arith.addf %10, %12 : vector<8x256xf32>
    %cst_11 = arith.constant 0.000000e+00 : f32
    %14 = vector.broadcast %cst_11 : f32 to vector<8x256xf32>
    %15 = arith.maximumf %13, %14 : vector<8x256xf32>
    %16 = arith.truncf %15 : vector<8x256xf32> to vector<8x256xbf16>
    %c0_12 = arith.constant 0 : index
    %c0_13 = arith.constant 0 : index
    %17 = vector.load %arg6[%c0_12, %c0_13] : memref<256x128xbf16, #tpu.memory_space<vmem>>, vector<256x128xbf16>
    %cst_14 = arith.constant dense<0.000000e+00> : vector<8x128xf32>
    %18 = tpu.matmul %16, %17, %cst_14 {dimension_numbers = #tpu.dot_dimension_numbers<[1], [0], [0], [1], [0, 0, 1, 1], [], []>} : vector<8x256xbf16>, vector<256x128xbf16>, vector<8x128xf32> -> vector<8x128xf32>
    %c0_15 = arith.constant 0 : index
    %c0_16 = arith.constant 0 : index
    %19 = vector.load %arg7[%c0_15, %c0_16] : memref<1x128xf32, #tpu.memory_space<vmem>>, vector<1x128xf32>
    %20 = vector.broadcast %19 : vector<1x128xf32> to vector<8x128xf32>
    %21 = arith.addf %18, %20 : vector<8x128xf32>
    %cst_17 = arith.constant dense<0xFF800000> : vector<8xf32>
    %22 = vector.multi_reduction <maximumf>, %21, %cst_17 [1] : vector<8x128xf32> to vector<8xf32>
    %23 = vector.shape_cast %22 : vector<8xf32> to vector<8x1xf32>
    %24 = vector.broadcast %23 : vector<8x1xf32> to vector<8x128xf32>
    %25 = arith.subf %21, %24 : vector<8x128xf32>
    %26 = math.exp %25 : vector<8x128xf32>
    %cst_18 = arith.constant dense<0.000000e+00> : vector<8xf32>
    %27 = vector.multi_reduction <add>, %26, %cst_18 [1] : vector<8x128xf32> to vector<8xf32>
    %28 = vector.shape_cast %27 : vector<8xf32> to vector<8x1xf32>
    %29 = tpu.reciprocal %28 {approx = true} : vector<8x1xf32> -> vector<8x1xf32>
    %30 = vector.broadcast %29 : vector<8x1xf32> to vector<8x128xf32>
    %31 = arith.mulf %26, %30 : vector<8x128xf32>
    %c0_19 = arith.constant 0 : index
    %c0_20 = arith.constant 0 : index
    %32 = vector.load %arg8[%c0_19, %c0_20] : memref<8x128xf32, #tpu.memory_space<vmem>>, vector<8x128xf32>
    tpu.vector_store %arg8[%c0_19, %c0_20], %31 {strides = array<i32>} : memref<8x128xf32, #tpu.memory_space<vmem>>, vector<8x128xf32>,
    return
  }
  func.func @transform_0(%arg0: i32) -> (i32, i32) {
    %c0_i32 = arith.constant 0 : i32
    %c0_i32_0 = arith.constant 0 : i32
    return %arg0, %c0_i32 : i32, i32
  }
  func.func @transform_1(%arg0: i32) -> (i32, i32) {
    %c0_i32 = arith.constant 0 : i32
    %c0_i32_0 = arith.constant 0 : i32
    %c0_i32_1 = arith.constant 0 : i32
    return %c0_i32, %c0_i32_0 : i32, i32
  }
  func.func @transform_2(%arg0: i32) -> (i32, i32) {
    %c0_i32 = arith.constant 0 : i32
    %c0_i32_0 = arith.constant 0 : i32
    %c0_i32_1 = arith.constant 0 : i32
    return %c0_i32, %c0_i32_0 : i32, i32
  }
  func.func @transform_3(%arg0: i32) -> (i32, i32) {
    %c0_i32 = arith.constant 0 : i32
    %c0_i32_0 = arith.constant 0 : i32
    %c0_i32_1 = arith.constant 0 : i32
    return %c0_i32, %c0_i32_0 : i32, i32
  }
  func.func @transform_4(%arg0: i32) -> (i32, i32) {
    %c0_i32 = arith.constant 0 : i32
    %c0_i32_0 = arith.constant 0 : i32
    %c0_i32_1 = arith.constant 0 : i32
    return %c0_i32, %c0_i32_0 : i32, i32
  }
  func.func @transform_5(%arg0: i32) -> (i32, i32) {
    %c0_i32 = arith.constant 0 : i32
    %c0_i32_0 = arith.constant 0 : i32
    %c0_i32_1 = arith.constant 0 : i32
    return %c0_i32, %c0_i32_0 : i32, i32
  }
  func.func @transform_6(%arg0: i32) -> (i32, i32) {
    %c0_i32 = arith.constant 0 : i32
    %c0_i32_0 = arith.constant 0 : i32
    %c0_i32_1 = arith.constant 0 : i32
    return %c0_i32, %c0_i32_0 : i32, i32
  }
  func.func @transform_7(%arg0: i32) -> (i32, i32) {
    %c0_i32 = arith.constant 0 : i32
    %c0_i32_0 = arith.constant 0 : i32
    return %arg0, %c0_i32 : i32, i32
  }
}

</mosaic_0001>

<llo_original>
// kernel: tpu_custom_call.1
$region0: #{tpu_custom_call.1}
  #allocation0 [shape = 'u32[]', space=smem, size = 0x4, offset = 0x4, fixed_abs, tag = 'smem constant byte address 0x4 - core index']
  #allocation1 [shape = 'u32[72,128]{1,0:T(1,128)}', space=vmem, size = 0x9000, scoped, tag = 'internal scratch']
  %s0 = inlined_call_operand.hbm [shape: bf16[8,896], index: 0, kind: input, shape index: {}]
  %s1 = inlined_call_operand.hbm [shape: bf16[896,128], index: 1, kind: input, shape index: {}]
  %s2 = inlined_call_operand.vmem [shape: f32[1,128], index: 2, kind: input, shape index: {}]
  %s3 = inlined_call_operand.hbm [shape: bf16[128,256], index: 3, kind: input, shape index: {}]
  %s4 = inlined_call_operand.vmem [shape: f32[1,256], index: 4, kind: input, shape index: {}]
  %s5 = inlined_call_operand.hbm [shape: bf16[256,128], index: 5, kind: input, shape index: {}]
  %s6 = inlined_call_operand.vmem [shape: f32[1,128], index: 6, kind: input, shape index: {}]
  %s7 = inlined_call_operand.hbm [shape: f32[8,128], index: 7, kind: output, shape index: {}]
  %s8 = sld [smem:[#allocation0]]
  $region54: #{tpu_custom_call.1} parent=0
    _
  %s10 = ssub.s32 1, %s8
  %s11 = scalar_select 0, %s10, %s8
  $region1: #{tpu_custom_call.1} parent=0
    #allocation2 [shape = 'u8[14336]{0}', space=vmem, size = 0x3800, scoped, tag = 'input window, operand 0, single buffered']
    #allocation3 [shape = 's32[1]{0}', space=sflag, size = 0x4, scoped, tag = 'scoped memory for tpu_custom_call.1']
    #allocation4 [shape = 's32[1]{0}', space=sflag, size = 0x4, scoped, tag = 'scoped memory for tpu_custom_call.1']
    #allocation5 [shape = 'u8[229376]{0}', space=vmem, size = 0x38000, scoped, tag = 'input window, operand 1, single buffered']
    #allocation6 [shape = 's32[1]{0}', space=sflag, size = 0x4, scoped, tag = 'scoped memory for tpu_custom_call.1']
    #allocation7 [shape = 'u8[65536]{0}', space=vmem, size = 0x10000, scoped, tag = 'input window, operand 3, single buffered']
    #allocation8 [shape = 'u8[65536]{0}', space=vmem, size = 0x10000, scoped, tag = 'input window, operand 5, single buffered']
    #allocation9 [shape = 's32[1]{0}', space=sflag, size = 0x4, scoped, tag = 'scoped memory for tpu_custom_call.1']
    #allocation10 [shape = 'u8[4096]{0}', space=vmem, size = 0x1000, scoped, tag = 'output window, operand 0, single buffered']
    %12 = vsyncpa [#allocation3], 0
    %13 = vsyncpa [#allocation6], 0
    %14 = vsyncpa [#allocation9], 0
    %15 = vsyncpa [#allocation4], 0
    // Predicated region
    $region2: #{tpu_custom_call.1} parent=1 // pred_check
      _
    $region3: #{tpu_custom_call.1} parent=1 // pred_check_branch
      %17 = sbr.rel (0) target = $region5
    $region4: #{tpu_custom_call.1} parent=1 // pred_region
      %19 = vsyncadd [#allocation3], 0
      %s21 = sshll.u32 %s0, 4
      %s22 = int_to_ptr.hbm [resolvable:$true] %s21
      %s23 = sshll.u32 [#allocation2], 4
      %s24 = int_to_ptr.vmem [resolvable:$true] %s23
      %26 = dma.hbm_to_vmem [thread:$0]  %s22, 448, %s24, [#allocation3]
    $region5: #{tpu_custom_call.1} parent=1 // pred_fallthru
      _
    // Predicated region
    $region6: #{tpu_custom_call.1} parent=1 // pred_check
      _
    $region7: #{tpu_custom_call.1} parent=1 // pred_check_branch
      %28 = sbr.rel (0) target = $region9
    $region8: #{tpu_custom_call.1} parent=1 // pred_region
      %30 = vsyncadd [#allocation6], 0
      %s31 = sshll.u32 %s1, 4
      %s32 = int_to_ptr.hbm [resolvable:$true] %s31
      %s33 = sshll.u32 [#allocation5], 4
      %s34 = int_to_ptr.vmem [resolvable:$true] %s33
      %39 = dma.hbm_to_vmem [thread:$0]  %s32, 7168, %s34, [#allocation6], 64, 64, 4
    $region9: #{tpu_custom_call.1} parent=1 // pred_fallthru
      _
    // Predicated region
    $region10: #{tpu_custom_call.1} parent=1 // pred_check
      _
    $region11: #{tpu_custom_call.1} parent=1 // pred_check_branch
      %41 = sbr.rel (0) target = $region13
    $region12: #{tpu_custom_call.1} parent=1 // pred_region
      _
    $region13: #{tpu_custom_call.1} parent=1 // pred_fallthru
      _
    // Predicated region
    $region14: #{tpu_custom_call.1} parent=1 // pred_check
      _
    $region15: #{tpu_custom_call.1} parent=1 // pred_check_branch
      %43 = sbr.rel (0) target = $region17
    $region16: #{tpu_custom_call.1} parent=1 // pred_region
      %45 = vsyncadd [#allocation6], 0
      %s46 = sshll.u32 %s3, 4
      %s47 = int_to_ptr.hbm [resolvable:$true] %s46
      %s48 = sshll.u32 [#allocation7], 4
      %s49 = int_to_ptr.vmem [resolvable:$true] %s48
      %54 = dma.hbm_to_vmem [thread:$0]  %s47, 2048, %s49, [#allocation6], 128, 128, 8
    $region17: #{tpu_custom_call.1} parent=1 // pred_fallthru
      _
    // Predicated region
    $region18: #{tpu_custom_call.1} parent=1 // pred_check
      _
    $region19: #{tpu_custom_call.1} parent=1 // pred_check_branch
      %56 = sbr.rel (0) target = $region21
    $region20: #{tpu_custom_call.1} parent=1 // pred_region
      _
    $region21: #{tpu_custom_call.1} parent=1 // pred_fallthru
      _
    // Predicated region
    $region22: #{tpu_custom_call.1} parent=1 // pred_check
      _
    $region23: #{tpu_custom_call.1} parent=1 // pred_check_branch
      %58 = sbr.rel (0) target = $region25
    $region24: #{tpu_custom_call.1} parent=1 // pred_region
      %60 = vsyncadd [#allocation9], 0
      %s61 = sshll.u32 %s5, 4
      %s62 = int_to_ptr.hbm [resolvable:$true] %s61
      %s63 = sshll.u32 [#allocation8], 4
      %s64 = int_to_ptr.vmem [resolvable:$true] %s63
      %69 = dma.hbm_to_vmem [thread:$0]  %s62, 2048, %s64, [#allocation9], 64, 64, 4
    $region25: #{tpu_custom_call.1} parent=1 // pred_fallthru
      _
    // Predicated region
    $region26: #{tpu_custom_call.1} parent=1 // pred_check
      _
    $region27: #{tpu_custom_call.1} parent=1 // pred_check_branch
      %71 = sbr.rel (0) target = $region29
    $region28: #{tpu_custom_call.1} parent=1 // pred_region
      _
    $region29: #{tpu_custom_call.1} parent=1 // pred_fallthru
      _
    // Predicated region
    $region30: #{tpu_custom_call.1} parent=1 // pred_check
      _
    $region31: #{tpu_custom_call.1} parent=1 // pred_check_branch
      %73 = sbr.rel (0) target = $region33
    $region32: #{tpu_custom_call.1} parent=1 // pred_region
      %75 = dma.done [#allocation3], 448
    $region33: #{tpu_custom_call.1} parent=1 // pred_fallthru
      _
    // Predicated region
    $region34: #{tpu_custom_call.1} parent=1 // pred_check
      _
    $region35: #{tpu_custom_call.1} parent=1 // pred_check_branch
      %77 = sbr.rel (0) target = $region37
    $region36: #{tpu_custom_call.1} parent=1 // pred_region
      %79 = dma.done [#allocation6], 7168
    $region37: #{tpu_custom_call.1} parent=1 // pred_fallthru
      _
    // Predicated region
    $region38: #{tpu_custom_call.1} parent=1 // pred_check
      _
    $region39: #{tpu_custom_call.1} parent=1 // pred_check_branch
      %81 = sbr.rel (0) target = $region41
    $region40: #{tpu_custom_call.1} parent=1 // pred_region
      %83 = dma.done [#allocation6], 2048
    $region41: #{tpu_custom_call.1} parent=1 // pred_fallthru
      _
    // Predicated region
    $region42: #{tpu_custom_call.1} parent=1 // pred_check
      _
    $region43: #{tpu_custom_call.1} parent=1 // pred_check_branch
      %85 = sbr.rel (0) target = $region45
    $region44: #{tpu_custom_call.1} parent=1 // pred_region
      %87 = dma.done [#allocation9], 2048
    $region45: #{tpu_custom_call.1} parent=1 // pred_fallthru
      _
    %v88 = vld [vmem:[#allocation2] sm:$0xff]
    %v89 = vld [vmem:[#allocation2 + $0x8] sm:$0xff]
    %v90 = vld [vmem:[#allocation2 + $0x10] sm:$0xff]
    %v91 = vld [vmem:[#allocation2 + $0x18] sm:$0xf]
    %v92 = vld [vmem:[#allocation5] sm:$0xf]
    %v93 = vld [vmem:[#allocation5 + $0x4] sm:$0xf]
    %v94 = vld [vmem:[#allocation5 + $0x8] sm:$0xf]
    %v95 = vld [vmem:[#allocation5 + $0xc] sm:$0xf]
    %v96 = vld [vmem:[#allocation5 + $0x10] sm:$0xf]
    %v97 = vld [vmem:[#allocation5 + $0x14] sm:$0xf]
    %v98 = vld [vmem:[#allocation5 + $0x18] sm:$0xf]
    %v99 = vld [vmem:[#allocation5 + $0x1c] sm:$0xf]
    %v100 = vld [vmem:[#allocation5 + $0x20] sm:$0xf]
    %v101 = vld [vmem:[#allocation5 + $0x24] sm:$0xf]
    %v102 = vld [vmem:[#allocation5 + $0x28] sm:$0xf]
    %v103 = vld [vmem:[#allocation5 + $0x2c] sm:$0xf]
    %v104 = vld [vmem:[#allocation5 + $0x30] sm:$0xf]
    %v105 = vld [vmem:[#allocation5 + $0x34] sm:$0xf]
    %v106 = vld [vmem:[#allocation5 + $0x38] sm:$0xf]
    %v107 = vld [vmem:[#allocation5 + $0x3c] sm:$0xf]
    %v108 = vld [vmem:[#allocation5 + $0x40] sm:$0xf]
    %v109 = vld [vmem:[#allocation5 + $0x44] sm:$0xf]
    %v110 = vld [vmem:[#allocation5 + $0x48] sm:$0xf]
    %v111 = vld [vmem:[#allocation5 + $0x4c] sm:$0xf]
    %v112 = vld [vmem:[#allocation5 + $0x50] sm:$0xf]
    %v113 = vld [vmem:[#allocation5 + $0x54] sm:$0xf]
    %v114 = vld [vmem:[#allocation5 + $0x58] sm:$0xf]
    %v115 = vld [vmem:[#allocation5 + $0x5c] sm:$0xf]
    %v116 = vld [vmem:[#allocation5 + $0x60] sm:$0xf]
    %v117 = vld [vmem:[#allocation5 + $0x64] sm:$0xf]
    %v118 = vld [vmem:[#allocation5 + $0x68] sm:$0xf]
    %v119 = vld [vmem:[#allocation5 + $0x6c] sm:$0xf]
    %v120 = vld [vmem:[#allocation5 + $0x70] sm:$0xf]
    %v121 = vld [vmem:[#allocation5 + $0x74] sm:$0xf]
    %v122 = vld [vmem:[#allocation5 + $0x78] sm:$0xf]
    %v123 = vld [vmem:[#allocation5 + $0x7c] sm:$0xf]
    %v124 = vld [vmem:[#allocation5 + $0x80] sm:$0xf]
    %v125 = vld [vmem:[#allocation5 + $0x84] sm:$0xf]
    %v126 = vld [vmem:[#allocation5 + $0x88] sm:$0xf]
    %v127 = vld [vmem:[#allocation5 + $0x8c] sm:$0xf]
    %v128 = vld [vmem:[#allocation5 + $0x90] sm:$0xf]
    %v129 = vld [vmem:[#allocation5 + $0x94] sm:$0xf]
    %v130 = vld [vmem:[#allocation5 + $0x98] sm:$0xf]
    %v131 = vld [vmem:[#allocation5 + $0x9c] sm:$0xf]
    %v132 = vld [vmem:[#allocation5 + $0xa0] sm:$0xf]
    %v133 = vld [vmem:[#allocation5 + $0xa4] sm:$0xf]
    %v134 = vld [vmem:[#allocation5 + $0xa8] sm:$0xf]
    %v135 = vld [vmem:[#allocation5 + $0xac] sm:$0xf]
    %v136 = vld [vmem:[#allocation5 + $0xb0] sm:$0xf]
    %v137 = vld [vmem:[#allocation5 + $0xb4] sm:$0xf]
    %v138 = vld [vmem:[#allocation5 + $0xb8] sm:$0xf]
    %v139 = vld [vmem:[#allocation5 + $0xbc] sm:$0xf]
    %v140 = vld [vmem:[#allocation5 + $0xc0] sm:$0xf]
    %v141 = vld [vmem:[#allocation5 + $0xc4] sm:$0xf]
    %v142 = vld [vmem:[#allocation5 + $0xc8] sm:$0xf]
    %v143 = vld [vmem:[#allocation5 + $0xcc] sm:$0xf]
    %v144 = vld [vmem:[#allocation5 + $0xd0] sm:$0xf]
    %v145 = vld [vmem:[#allocation5 + $0xd4] sm:$0xf]
    %v146 = vld [vmem:[#allocation5 + $0xd8] sm:$0xf]
    %v147 = vld [vmem:[#allocation5 + $0xdc] sm:$0xf]
    %v148 = vld [vmem:[#allocation5 + $0xe0] sm:$0xf]
    %v149 = vld [vmem:[#allocation5 + $0xe4] sm:$0xf]
    %v150 = vld [vmem:[#allocation5 + $0xe8] sm:$0xf]
    %v151 = vld [vmem:[#allocation5 + $0xec] sm:$0xf]
    %v152 = vld [vmem:[#allocation5 + $0xf0] sm:$0xf]
    %v153 = vld [vmem:[#allocation5 + $0xf4] sm:$0xf]
    %v154 = vld [vmem:[#allocation5 + $0xf8] sm:$0xf]
    %v155 = vld [vmem:[#allocation5 + $0xfc] sm:$0xf]
    %v156 = vld [vmem:[#allocation5 + $0x100] sm:$0xf]
    %v157 = vld [vmem:[#allocation5 + $0x104] sm:$0xf]
    %v158 = vld [vmem:[#allocation5 + $0x108] sm:$0xf]
    %v159 = vld [vmem:[#allocation5 + $0x10c] sm:$0xf]
    %v160 = vld [vmem:[#allocation5 + $0x110] sm:$0xf]
    %v161 = vld [vmem:[#allocation5 + $0x114] sm:$0xf]
    %v162 = vld [vmem:[#allocation5 + $0x118] sm:$0xf]
    %v163 = vld [vmem:[#allocation5 + $0x11c] sm:$0xf]
    %v164 = vld [vmem:[#allocation5 + $0x120] sm:$0xf]
    %v165 = vld [vmem:[#allocation5 + $0x124] sm:$0xf]
    %v166 = vld [vmem:[#allocation5 + $0x128] sm:$0xf]
    %v167 = vld [vmem:[#allocation5 + $0x12c] sm:$0xf]
    %v168 = vld [vmem:[#allocation5 + $0x130] sm:$0xf]
    %v169 = vld [vmem:[#allocation5 + $0x134] sm:$0xf]
    %v170 = vld [vmem:[#allocation5 + $0x138] sm:$0xf]
    %v171 = vld [vmem:[#allocation5 + $0x13c] sm:$0xf]
    %v172 = vld [vmem:[#allocation5 + $0x140] sm:$0xf]
    %v173 = vld [vmem:[#allocation5 + $0x144] sm:$0xf]
    %v174 = vld [vmem:[#allocation5 + $0x148] sm:$0xf]
    %v175 = vld [vmem:[#allocation5 + $0x14c] sm:$0xf]
    %v176 = vld [vmem:[#allocation5 + $0x150] sm:$0xf]
    %v177 = vld [vmem:[#allocation5 + $0x154] sm:$0xf]
    %v178 = vld [vmem:[#allocation5 + $0x158] sm:$0xf]
    %v179 = vld [vmem:[#allocation5 + $0x15c] sm:$0xf]
    %v180 = vld [vmem:[#allocation5 + $0x160] sm:$0xf]
    %v181 = vld [vmem:[#allocation5 + $0x164] sm:$0xf]
    %v182 = vld [vmem:[#allocation5 + $0x168] sm:$0xf]
    %v183 = vld [vmem:[#allocation5 + $0x16c] sm:$0xf]
    %v184 = vld [vmem:[#allocation5 + $0x170] sm:$0xf]
    %v185 = vld [vmem:[#allocation5 + $0x174] sm:$0xf]
    %v186 = vld [vmem:[#allocation5 + $0x178] sm:$0xf]
    %v187 = vld [vmem:[#allocation5 + $0x17c] sm:$0xf]
    %v188 = vld [vmem:[#allocation5 + $0x180] sm:$0xf]
    %v189 = vld [vmem:[#allocation5 + $0x184] sm:$0xf]
    %v190 = vld [vmem:[#allocation5 + $0x188] sm:$0xf]
    %v191 = vld [vmem:[#allocation5 + $0x18c] sm:$0xf]
    %v192 = vld [vmem:[#allocation5 + $0x190] sm:$0xf]
    %v193 = vld [vmem:[#allocation5 + $0x194] sm:$0xf]
    %v194 = vld [vmem:[#allocation5 + $0x198] sm:$0xf]
    %v195 = vld [vmem:[#allocation5 + $0x19c] sm:$0xf]
    %v196 = vld [vmem:[#allocation5 + $0x1a0] sm:$0xf]
    %v197 = vld [vmem:[#allocation5 + $0x1a4] sm:$0xf]
    %v198 = vld [vmem:[#allocation5 + $0x1a8] sm:$0xf]
    %v199 = vld [vmem:[#allocation5 + $0x1ac] sm:$0xf]
    %v200 = vld [vmem:[#allocation5 + $0x1b0] sm:$0xf]
    %v201 = vld [vmem:[#allocation5 + $0x1b4] sm:$0xf]
    %v202 = vld [vmem:[#allocation5 + $0x1b8] sm:$0xf]
    %v203 = vld [vmem:[#allocation5 + $0x1bc] sm:$0xf]
    %v204 = vld [vmem:[%s2] sm:$0x1]
    %v206 = vperm.slane %v204, 0
    %v212 = vunpack.c.l.b16 %v88
    %v213 = vunpack.c.h.b16 %v88
    %v214 = vunpack.c.l.b16 %v89
    %v215 = vunpack.c.h.b16 %v89
    %v216 = vunpack.c.l.b16 %v90
    %v217 = vunpack.c.h.b16 %v90
    %v218 = vunpack.c.l.b16 %v91
    %v219 = vpack.c.b16 %v212, %v212
    %v220 = vpack.c.b16 %v213, %v213
    %v221 = vpack.c.b16 %v214, %v214
    %v222 = vpack.c.b16 %v215, %v215
    %v223 = vpack.c.b16 %v216, %v216
    %v224 = vpack.c.b16 %v217, %v217
    %v225 = vpack.c.b16 %v218, %v218
    %v345 = vunpack.c.l.b16 %v92
    %v346 = vunpack.c.l.b16 %v93
    %v347 = vunpack.c.l.b16 %v94
    %v348 = vunpack.c.l.b16 %v95
    %v349 = vunpack.c.l.b16 %v96
    %v350 = vunpack.c.l.b16 %v97
    %v351 = vunpack.c.l.b16 %v98
    %v352 = vunpack.c.l.b16 %v99
    %v353 = vunpack.c.l.b16 %v100
    %v354 = vunpack.c.l.b16 %v101
    %v355 = vunpack.c.l.b16 %v102
    %v356 = vunpack.c.l.b16 %v103
    %v357 = vunpack.c.l.b16 %v104
    %v358 = vunpack.c.l.b16 %v105
    %v359 = vunpack.c.l.b16 %v106
    %v360 = vunpack.c.l.b16 %v107
    %v361 = vunpack.c.l.b16 %v108
    %v362 = vunpack.c.l.b16 %v109
    %v363 = vunpack.c.l.b16 %v110
    %v364 = vunpack.c.l.b16 %v111
    %v365 = vunpack.c.l.b16 %v112
    %v366 = vunpack.c.l.b16 %v113
    %v367 = vunpack.c.l.b16 %v114
    %v368 = vunpack.c.l.b16 %v115
    %v369 = vunpack.c.l.b16 %v116
    %v370 = vunpack.c.l.b16 %v117
    %v371 = vunpack.c.l.b16 %v118
    %v372 = vunpack.c.l.b16 %v119
    %v373 = vunpack.c.l.b16 %v120
    %v374 = vunpack.c.l.b16 %v121
    %v375 = vunpack.c.l.b16 %v122
    %v376 = vunpack.c.l.b16 %v123
    %v377 = vunpack.c.l.b16 %v124
    %v378 = vunpack.c.l.b16 %v125
    %v379 = vunpack.c.l.b16 %v126
    %v380 = vunpack.c.l.b16 %v127
    %v381 = vunpack.c.l.b16 %v128
    %v382 = vunpack.c.l.b16 %v129
    %v383 = vunpack.c.l.b16 %v130
    %v384 = vunpack.c.l.b16 %v131
    %v385 = vunpack.c.l.b16 %v132
    %v386 = vunpack.c.l.b16 %v133
    %v387 = vunpack.c.l.b16 %v134
    %v388 = vunpack.c.l.b16 %v135
    %v389 = vunpack.c.l.b16 %v136
    %v390 = vunpack.c.l.b16 %v137
    %v391 = vunpack.c.l.b16 %v138
    %v392 = vunpack.c.l.b16 %v139
    %v393 = vunpack.c.l.b16 %v140
    %v394 = vunpack.c.l.b16 %v141
    %v395 = vunpack.c.l.b16 %v142
    %v396 = vunpack.c.l.b16 %v143
    %v397 = vunpack.c.l.b16 %v144
    %v398 = vunpack.c.l.b16 %v145
    %v399 = vunpack.c.l.b16 %v146
    %v400 = vunpack.c.l.b16 %v147
    %v401 = vunpack.c.l.b16 %v148
    %v402 = vunpack.c.l.b16 %v149
    %v403 = vunpack.c.l.b16 %v150
    %v404 = vunpack.c.l.b16 %v151
    %v405 = vunpack.c.l.b16 %v152
    %v406 = vunpack.c.l.b16 %v153
    %v407 = vunpack.c.l.b16 %v154
    %v408 = vunpack.c.l.b16 %v155
    %v409 = vunpack.c.l.b16 %v156
    %v410 = vunpack.c.l.b16 %v157
    %v411 = vunpack.c.l.b16 %v158
    %v412 = vunpack.c.l.b16 %v159
    %v413 = vunpack.c.l.b16 %v160
    %v414 = vunpack.c.l.b16 %v161
    %v415 = vunpack.c.l.b16 %v162
    %v416 = vunpack.c.l.b16 %v163
    %v417 = vunpack.c.l.b16 %v164
    %v418 = vunpack.c.l.b16 %v165
    %v419 = vunpack.c.l.b16 %v166
    %v420 = vunpack.c.l.b16 %v167
    %v421 = vunpack.c.l.b16 %v168
    %v422 = vunpack.c.l.b16 %v169
    %v423 = vunpack.c.l.b16 %v170
    %v424 = vunpack.c.l.b16 %v171
    %v425 = vunpack.c.l.b16 %v172
    %v426 = vunpack.c.l.b16 %v173
    %v427 = vunpack.c.l.b16 %v174
    %v428 = vunpack.c.l.b16 %v175
    %v429 = vunpack.c.l.b16 %v176
    %v430 = vunpack.c.l.b16 %v177
    %v431 = vunpack.c.l.b16 %v178
    %v432 = vunpack.c.l.b16 %v179
    %v433 = vunpack.c.l.b16 %v180
    %v434 = vunpack.c.l.b16 %v181
    %v435 = vunpack.c.l.b16 %v182
    %v436 = vunpack.c.l.b16 %v183
    %v437 = vunpack.c.l.b16 %v184
    %v438 = vunpack.c.l.b16 %v185
    %v439 = vunpack.c.l.b16 %v186
    %v440 = vunpack.c.l.b16 %v187
    %v441 = vunpack.c.l.b16 %v188
    %v442 = vunpack.c.l.b16 %v189
    %v443 = vunpack.c.l.b16 %v190
    %v444 = vunpack.c.l.b16 %v191
    %v445 = vunpack.c.l.b16 %v192
    %v446 = vunpack.c.l.b16 %v193
    %v447 = vunpack.c.l.b16 %v194
    %v448 = vunpack.c.l.b16 %v195
    %v449 = vunpack.c.l.b16 %v196
    %v450 = vunpack.c.l.b16 %v197
    %v451 = vunpack.c.l.b16 %v198
    %v452 = vunpack.c.l.b16 %v199
    %v453 = vunpack.c.l.b16 %v200
    %v454 = vunpack.c.l.b16 %v201
    %v455 = vunpack.c.l.b16 %v202
    %v456 = vunpack.c.l.b16 %v203
    %v457 = vpack.c.b16 %v346, %v345
    %v458 = vpack.c.b16 %v348, %v347
    %v459 = vpack.c.b16 %v350, %v349
    %v460 = vpack.c.b16 %v352, %v351
    %v461 = vpack.c.b16 %v354, %v353
    %v462 = vpack.c.b16 %v356, %v355
    %v463 = vpack.c.b16 %v358, %v357
    %v464 = vpack.c.b16 %v360, %v359
    %v465 = vpack.c.b16 %v362, %v361
    %v466 = vpack.c.b16 %v364, %v363
    %v467 = vpack.c.b16 %v366, %v365
    %v468 = vpack.c.b16 %v368, %v367
    %v469 = vpack.c.b16 %v370, %v369
    %v470 = vpack.c.b16 %v372, %v371
    %v471 = vpack.c.b16 %v374, %v373
    %v472 = vpack.c.b16 %v376, %v375
    %v473 = vpack.c.b16 %v378, %v377
    %v474 = vpack.c.b16 %v380, %v379
    %v475 = vpack.c.b16 %v382, %v381
    %v476 = vpack.c.b16 %v384, %v383
    %v477 = vpack.c.b16 %v386, %v385
    %v478 = vpack.c.b16 %v388, %v387
    %v479 = vpack.c.b16 %v390, %v389
    %v480 = vpack.c.b16 %v392, %v391
    %v481 = vpack.c.b16 %v394, %v393
    %v482 = vpack.c.b16 %v396, %v395
    %v483 = vpack.c.b16 %v398, %v397
    %v484 = vpack.c.b16 %v400, %v399
    %v485 = vpack.c.b16 %v402, %v401
    %v486 = vpack.c.b16 %v404, %v403
    %v487 = vpack.c.b16 %v406, %v405
    %v488 = vpack.c.b16 %v408, %v407
    %v489 = vpack.c.b16 %v410, %v409
    %v490 = vpack.c.b16 %v412, %v411
    %v491 = vpack.c.b16 %v414, %v413
    %v492 = vpack.c.b16 %v416, %v415
    %v493 = vpack.c.b16 %v418, %v417
    %v494 = vpack.c.b16 %v420, %v419
    %v495 = vpack.c.b16 %v422, %v421
    %v496 = vpack.c.b16 %v424, %v423
    %v497 = vpack.c.b16 %v426, %v425
    %v498 = vpack.c.b16 %v428, %v427
    %v499 = vpack.c.b16 %v430, %v429
    %v500 = vpack.c.b16 %v432, %v431
    %v501 = vpack.c.b16 %v434, %v433
    %v502 = vpack.c.b16 %v436, %v435
    %v503 = vpack.c.b16 %v438, %v437
    %v504 = vpack.c.b16 %v440, %v439
    %v505 = vpack.c.b16 %v442, %v441
    %v506 = vpack.c.b16 %v444, %v443
    %v507 = vpack.c.b16 %v446, %v445
    %v508 = vpack.c.b16 %v448, %v447
    %v509 = vpack.c.b16 %v450, %v449
    %v510 = vpack.c.b16 %v452, %v451
    %v511 = vpack.c.b16 %v454, %v453
    %v512 = vpack.c.b16 %v456, %v455
    %569 = vmatpush.bf16.msra.mxu0 %v464
    %570 = vmatpush.bf16.msra.mxu0 %v463
    %571 = vmatpush.bf16.msra.mxu0 %v462
    %572 = vmatpush.bf16.msra.mxu0 %v461
    %573 = vmatpush.bf16.msra.mxu0 %v460
    %574 = vmatpush.bf16.msra.mxu0 %v459
    %575 = vmatpush.bf16.msra.mxu0 %v458
    %576 = vmatpush.bf16.msra.mxu0 %v457
    %577 = vmatmul.bf16.gmra.mxu0 %v219
    %v578 = vpop.f32.mrf.mxu0
    %v579 = vadd.f32 %v206, %v578
    %v580 = vpop.f32.mrf.mxu0
    %581 = vdwg.mxu0
    %582 = vmatpush.bf16.msra.mxu0 %v472
    %583 = vmatpush.bf16.msra.mxu0 %v471
    %584 = vmatpush.bf16.msra.mxu0 %v470
    %585 = vmatpush.bf16.msra.mxu0 %v469
    %586 = vmatpush.bf16.msra.mxu0 %v468
    %587 = vmatpush.bf16.msra.mxu0 %v467
    %588 = vmatpush.bf16.msra.mxu0 %v466
    %589 = vmatpush.bf16.msra.mxu0 %v465
    %590 = vmatmul.bf16.gmra.mxu0 %v220
    %v591 = vpop.f32.mrf.mxu0
    %v592 = vadd.f32 %v579, %v591
    %v593 = vpop.f32.mrf.mxu0
    %594 = vdwg.mxu0
    %595 = vmatpush.bf16.msra.mxu0 %v480
    %596 = vmatpush.bf16.msra.mxu0 %v479
    %597 = vmatpush.bf16.msra.mxu0 %v478
    %598 = vmatpush.bf16.msra.mxu0 %v477
    %599 = vmatpush.bf16.msra.mxu0 %v476
    %600 = vmatpush.bf16.msra.mxu0 %v475
    %601 = vmatpush.bf16.msra.mxu0 %v474
    %602 = vmatpush.bf16.msra.mxu0 %v473
    %603 = vmatmul.bf16.gmra.mxu0 %v221
    %v604 = vpop.f32.mrf.mxu0
    %v605 = vadd.f32 %v592, %v604
    %v606 = vpop.f32.mrf.mxu0
    %607 = vdwg.mxu0
    %608 = vmatpush.bf16.msra.mxu0 %v488
    %609 = vmatpush.bf16.msra.mxu0 %v487
    %610 = vmatpush.bf16.msra.mxu0 %v486
    %611 = vmatpush.bf16.msra.mxu0 %v485
    %612 = vmatpush.bf16.msra.mxu0 %v484
    %613 = vmatpush.bf16.msra.mxu0 %v483
    %614 = vmatpush.bf16.msra.mxu0 %v482
    %615 = vmatpush.bf16.msra.mxu0 %v481
    %616 = vmatmul.bf16.gmra.mxu0 %v222
    %v617 = vpop.f32.mrf.mxu0
    %v618 = vadd.f32 %v605, %v617
    %v619 = vpop.f32.mrf.mxu0
    %620 = vdwg.mxu0
    %621 = vmatpush.bf16.msra.mxu0 %v496
    %622 = vmatpush.bf16.msra.mxu0 %v495
    %623 = vmatpush.bf16.msra.mxu0 %v494
    %624 = vmatpush.bf16.msra.mxu0 %v493
    %625 = vmatpush.bf16.msra.mxu0 %v492
    %626 = vmatpush.bf16.msra.mxu0 %v491
    %627 = vmatpush.bf16.msra.mxu0 %v490
    %628 = vmatpush.bf16.msra.mxu0 %v489
    %629 = vmatmul.bf16.gmra.mxu0 %v223
    %v630 = vpop.f32.mrf.mxu0
    %v631 = vadd.f32 %v618, %v630
    %v632 = vpop.f32.mrf.mxu0
    %633 = vdwg.mxu0
    %634 = vmatpush.bf16.msra.mxu0 %v504
    %635 = vmatpush.bf16.msra.mxu0 %v503
    %636 = vmatpush.bf16.msra.mxu0 %v502
    %637 = vmatpush.bf16.msra.mxu0 %v501
    %638 = vmatpush.bf16.msra.mxu0 %v500
    %639 = vmatpush.bf16.msra.mxu0 %v499
    %640 = vmatpush.bf16.msra.mxu0 %v498
    %641 = vmatpush.bf16.msra.mxu0 %v497
    %642 = vmatmul.bf16.gmra.mxu0 %v224
    %v643 = vpop.f32.mrf.mxu0
    %v644 = vadd.f32 %v631, %v643
    %v645 = vpop.f32.mrf.mxu0
    %646 = vdwg.mxu0
    %647 = vmatpush.bf16.msra.mxu0 %v512
    %648 = vmatpush.bf16.msra.mxu0 %v511
    %649 = vmatpush.bf16.msra.mxu0 %v510
    %650 = vmatpush.bf16.msra.mxu0 %v509
    %651 = vmatpush.bf16.msra.mxu0 %v508
    %652 = vmatpush.bf16.msra.mxu0 %v507
    %653 = vmatpush.bf16.msra.mxu0 %v506
    %654 = vmatpush.bf16.msra.mxu0 %v505
    %655 = vmatmul.bf16.gmra.mxu0 %v225
    %v656 = vpop.f32.mrf.mxu0
    %v657 = vadd.f32 %v644, %v656
    %v658 = vpop.f32.mrf.mxu0
    %659 = vdwg.mxu0
    %v660 = vmax.f32 %v657, 0.0
    %v661 = vpack.c.bf16 %v660, %v660
    %v662 = vld [vmem:[#allocation7] sm:$0xff]
    %v663 = vld [vmem:[#allocation7 + $0x8] sm:$0xff]
    %v664 = vld [vmem:[#allocation7 + $0x10] sm:$0xff]
    %v665 = vld [vmem:[#allocation7 + $0x18] sm:$0xff]
    %v666 = vld [vmem:[#allocation7 + $0x20] sm:$0xff]
    %v667 = vld [vmem:[#allocation7 + $0x28] sm:$0xff]
    %v668 = vld [vmem:[#allocation7 + $0x30] sm:$0xff]
    %v669 = vld [vmem:[#allocation7 + $0x38] sm:$0xff]
    %v670 = vld [vmem:[#allocation7 + $0x40] sm:$0xff]
    %v671 = vld [vmem:[#allocation7 + $0x48] sm:$0xff]
    %v672 = vld [vmem:[#allocation7 + $0x50] sm:$0xff]
    %v673 = vld [vmem:[#allocation7 + $0x58] sm:$0xff]
    %v674 = vld [vmem:[#allocation7 + $0x60] sm:$0xff]
    %v675 = vld [vmem:[#allocation7 + $0x68] sm:$0xff]
    %v676 = vld [vmem:[#allocation7 + $0x70] sm:$0xff]
    %v677 = vld [vmem:[#allocation7 + $0x78] sm:$0xff]
    %v678 = vld [vmem:[%s4] sm:$0x3]
    %v680 = vperm.slane %v678, 0
    %v681 = vperm.slane %v678, 1
    %v700 = vunpack.c.l.b16 %v662
    %v701 = vunpack.c.h.b16 %v662
    %v702 = vunpack.c.l.b16 %v663
    %v703 = vunpack.c.h.b16 %v663
    %v704 = vunpack.c.l.b16 %v664
    %v705 = vunpack.c.h.b16 %v664
    %v706 = vunpack.c.l.b16 %v665
    %v707 = vunpack.c.h.b16 %v665
    %v708 = vunpack.c.l.b16 %v666
    %v709 = vunpack.c.h.b16 %v666
    %v710 = vunpack.c.l.b16 %v667
    %v711 = vunpack.c.h.b16 %v667
    %v712 = vunpack.c.l.b16 %v668
    %v713 = vunpack.c.h.b16 %v668
    %v714 = vunpack.c.l.b16 %v669
    %v715 = vunpack.c.h.b16 %v669
    %v716 = vunpack.c.l.b16 %v670
    %v717 = vunpack.c.h.b16 %v670
    %v718 = vunpack.c.l.b16 %v671
    %v719 = vunpack.c.h.b16 %v671
    %v720 = vunpack.c.l.b16 %v672
    %v721 = vunpack.c.h.b16 %v672
    %v722 = vunpack.c.l.b16 %v673
    %v723 = vunpack.c.h.b16 %v673
    %v724 = vunpack.c.l.b16 %v674
    %v725 = vunpack.c.h.b16 %v674
    %v726 = vunpack.c.l.b16 %v675
    %v727 = vunpack.c.h.b16 %v675
    %v728 = vunpack.c.l.b16 %v676
    %v729 = vunpack.c.h.b16 %v676
    %v730 = vunpack.c.l.b16 %v677
    %v731 = vunpack.c.h.b16 %v677
    %v732 = vpack.c.b16 %v702, %v700
    %v733 = vpack.c.b16 %v703, %v701
    %v734 = vpack.c.b16 %v706, %v704
    %v735 = vpack.c.b16 %v707, %v705
    %v736 = vpack.c.b16 %v710, %v708
    %v737 = vpack.c.b16 %v711, %v709
    %v738 = vpack.c.b16 %v714, %v712
    %v739 = vpack.c.b16 %v715, %v713
    %v740 = vpack.c.b16 %v718, %v716
    %v741 = vpack.c.b16 %v719, %v717
    %v742 = vpack.c.b16 %v722, %v720
    %v743 = vpack.c.b16 %v723, %v721
    %v744 = vpack.c.b16 %v726, %v724
    %v745 = vpack.c.b16 %v727, %v725
    %v746 = vpack.c.b16 %v730, %v728
    %v747 = vpack.c.b16 %v731, %v729
    %764 = vmatpush.bf16.msra.mxu0 %v746
    %765 = vmatpush.bf16.msra.mxu0 %v744
    %766 = vmatpush.bf16.msra.mxu0 %v742
    %767 = vmatpush.bf16.msra.mxu0 %v740
    %768 = vmatpush.bf16.msra.mxu0 %v738
    %769 = vmatpush.bf16.msra.mxu0 %v736
    %770 = vmatpush.bf16.msra.mxu0 %v734
    %771 = vmatpush.bf16.msra.mxu0 %v732
    %772 = vmatmul.bf16.gmra.mxu0 %v661
    %v773 = vpop.f32.mrf.mxu0
    %v774 = vadd.f32 %v680, %v773
    %v775 = vpop.f32.mrf.mxu0
    %776 = vdwg.mxu0
    %777 = vmatpush.bf16.msra.mxu0 %v747
    %778 = vmatpush.bf16.msra.mxu0 %v745
    %779 = vmatpush.bf16.msra.mxu0 %v743
    %780 = vmatpush.bf16.msra.mxu0 %v741
    %781 = vmatpush.bf16.msra.mxu0 %v739
    %782 = vmatpush.bf16.msra.mxu0 %v737
    %783 = vmatpush.bf16.msra.mxu0 %v735
    %784 = vmatpush.bf16.msra.mxu0 %v733
    %785 = vmatmul.bf16.gmra.mxu0 %v661
    %v786 = vpop.f32.mrf.mxu0
    %v787 = vadd.f32 %v681, %v786
    %v788 = vpop.f32.mrf.mxu0
    %789 = vdwg.mxu0
    %v790 = vmax.f32 %v774, 0.0
    %v791 = vmax.f32 %v787, 0.0
    %v792 = vpack.c.bf16 %v790, %v790
    %v793 = vpack.c.bf16 %v791, %v791
    %v794 = vld [vmem:[#allocation8] sm:$0xf]
    %v795 = vld [vmem:[#allocation8 + $0x4] sm:$0xf]
    %v796 = vld [vmem:[#allocation8 + $0x8] sm:$0xf]
    %v797 = vld [vmem:[#allocation8 + $0xc] sm:$0xf]
    %v798 = vld [vmem:[#allocation8 + $0x10] sm:$0xf]
    %v799 = vld [vmem:[#allocation8 + $0x14] sm:$0xf]
    %v800 = vld [vmem:[#allocation8 + $0x18] sm:$0xf]
    %v801 = vld [vmem:[#allocation8 + $0x1c] sm:$0xf]
    %v802 = vld [vmem:[#allocation8 + $0x20] sm:$0xf]
    %v803 = vld [vmem:[#allocation8 + $0x24] sm:$0xf]
    %v804 = vld [vmem:[#allocation8 + $0x28] sm:$0xf]
    %v805 = vld [vmem:[#allocation8 + $0x2c] sm:$0xf]
    %v806 = vld [vmem:[#allocation8 + $0x30] sm:$0xf]
    %v807 = vld [vmem:[#allocation8 + $0x34] sm:$0xf]
    %v808 = vld [vmem:[#allocation8 + $0x38] sm:$0xf]
    %v809 = vld [vmem:[#allocation8 + $0x3c] sm:$0xf]
    %v810 = vld [vmem:[#allocation8 + $0x40] sm:$0xf]
    %v811 = vld [vmem:[#allocation8 + $0x44] sm:$0xf]
    %v812 = vld [vmem:[#allocation8 + $0x48] sm:$0xf]
    %v813 = vld [vmem:[#allocation8 + $0x4c] sm:$0xf]
    %v814 = vld [vmem:[#allocation8 + $0x50] sm:$0xf]
    %v815 = vld [vmem:[#allocation8 + $0x54] sm:$0xf]
    %v816 = vld [vmem:[#allocation8 + $0x58] sm:$0xf]
    %v817 = vld [vmem:[#allocation8 + $0x5c] sm:$0xf]
    %v818 = vld [vmem:[#allocation8 + $0x60] sm:$0xf]
    %v819 = vld [vmem:[#allocation8 + $0x64] sm:$0xf]
    %v820 = vld [vmem:[#allocation8 + $0x68] sm:$0xf]
    %v821 = vld [vmem:[#allocation8 + $0x6c] sm:$0xf]
    %v822 = vld [vmem:[#allocation8 + $0x70] sm:$0xf]
    %v823 = vld [vmem:[#allocation8 + $0x74] sm:$0xf]
    %v824 = vld [vmem:[#allocation8 + $0x78] sm:$0xf]
    %v825 = vld [vmem:[#allocation8 + $0x7c] sm:$0xf]
    %v826 = vld [vmem:[%s6] sm:$0x1]
    %v828 = vperm.slane %v826, 0
    %v862 = vunpack.c.l.b16 %v794
    %v863 = vunpack.c.l.b16 %v795
    %v864 = vunpack.c.l.b16 %v796
    %v865 = vunpack.c.l.b16 %v797
    %v866 = vunpack.c.l.b16 %v798
    %v867 = vunpack.c.l.b16 %v799
    %v868 = vunpack.c.l.b16 %v800
    %v869 = vunpack.c.l.b16 %v801
    %v870 = vunpack.c.l.b16 %v802
    %v871 = vunpack.c.l.b16 %v803
    %v872 = vunpack.c.l.b16 %v804
    %v873 = vunpack.c.l.b16 %v805
    %v874 = vunpack.c.l.b16 %v806
    %v875 = vunpack.c.l.b16 %v807
    %v876 = vunpack.c.l.b16 %v808
    %v877 = vunpack.c.l.b16 %v809
    %v878 = vunpack.c.l.b16 %v810
    %v879 = vunpack.c.l.b16 %v811
    %v880 = vunpack.c.l.b16 %v812
    %v881 = vunpack.c.l.b16 %v813
    %v882 = vunpack.c.l.b16 %v814
    %v883 = vunpack.c.l.b16 %v815
    %v884 = vunpack.c.l.b16 %v816
    %v885 = vunpack.c.l.b16 %v817
    %v886 = vunpack.c.l.b16 %v818
    %v887 = vunpack.c.l.b16 %v819
    %v888 = vunpack.c.l.b16 %v820
    %v889 = vunpack.c.l.b16 %v821
    %v890 = vunpack.c.l.b16 %v822
    %v891 = vunpack.c.l.b16 %v823
    %v892 = vunpack.c.l.b16 %v824
    %v893 = vunpack.c.l.b16 %v825
    %v894 = vpack.c.b16 %v863, %v862
    %v895 = vpack.c.b16 %v865, %v864
    %v896 = vpack.c.b16 %v867, %v866
    %v897 = vpack.c.b16 %v869, %v868
    %v898 = vpack.c.b16 %v871, %v870
    %v899 = vpack.c.b16 %v873, %v872
    %v900 = vpack.c.b16 %v875, %v874
    %v901 = vpack.c.b16 %v877, %v876
    %v902 = vpack.c.b16 %v879, %v878
    %v903 = vpack.c.b16 %v881, %v880
    %v904 = vpack.c.b16 %v883, %v882
    %v905 = vpack.c.b16 %v885, %v884
    %v906 = vpack.c.b16 %v887, %v886
    %v907 = vpack.c.b16 %v889, %v888
    %v908 = vpack.c.b16 %v891, %v890
    %v909 = vpack.c.b16 %v893, %v892
    %926 = vmatpush.bf16.msra.mxu0 %v901
    %927 = vmatpush.bf16.msra.mxu0 %v900
    %928 = vmatpush.bf16.msra.mxu0 %v899
    %929 = vmatpush.bf16.msra.mxu0 %v898
    %930 = vmatpush.bf16.msra.mxu0 %v897
    %931 = vmatpush.bf16.msra.mxu0 %v896
    %932 = vmatpush.bf16.msra.mxu0 %v895
    %933 = vmatpush.bf16.msra.mxu0 %v894
    %934 = vmatmul.bf16.gmra.mxu0 %v792
    %v935 = vpop.f32.mrf.mxu0
    %v936 = vadd.f32 %v828, %v935
    %v937 = vpop.f32.mrf.mxu0
    %938 = vdwg.mxu0
    %939 = vmatpush.bf16.msra.mxu0 %v909
    %940 = vmatpush.bf16.msra.mxu0 %v908
    %941 = vmatpush.bf16.msra.mxu0 %v907
    %942 = vmatpush.bf16.msra.mxu0 %v906
    %943 = vmatpush.bf16.msra.mxu0 %v905
    %944 = vmatpush.bf16.msra.mxu0 %v904
    %945 = vmatpush.bf16.msra.mxu0 %v903
    %946 = vmatpush.bf16.msra.mxu0 %v902
    %947 = vmatmul.bf16.gmra.mxu0 %v793
    %v948 = vpop.f32.mrf.mxu0
    %v949 = vadd.f32 %v936, %v948
    %v950 = vpop.f32.mrf.mxu0
    %951 = vdwg.mxu0
    %952 = vmax.xlane.f32.xlu0 %v949
    %v953 = vpop.xlane.xlu0 %952
    %v954 = vsub.f32 %v949, %v953
    %v955 = vmul.f32 %v954, 1.442695
    %v956 = vpow.pop %v955
    %957 = vadd.xlane.f32.xlu0 %v956
    %v958 = vpop.xlane.xlu0 %957
    %v959 = vrcp.pop %v958
    %v960 = vmul.f32 %v956, %v959
    %961 = vst [vmem:[#allocation10] sm:$0xff] %v960
    // Predicated region
    $region46: #{tpu_custom_call.1} parent=1 // pred_check
      _
    $region47: #{tpu_custom_call.1} parent=1 // pred_check_branch
      %963 = sbr.rel (0) target = $region49
    $region48: #{tpu_custom_call.1} parent=1 // pred_region
      %965 = vsyncadd [#allocation4], 0
      %s967 = sshll.u32 [#allocation10], 4
      %s968 = int_to_ptr.vmem [resolvable:$true] %s967
      %s969 = sshll.u32 %s7, 4
      %s970 = int_to_ptr.hbm [resolvable:$true] %s969
      %972 = dma.vmem_to_hbm [thread:$0]  %s968, 128, %s970, [#allocation4]
    $region49: #{tpu_custom_call.1} parent=1 // pred_fallthru
      _
    // Predicated region
    $region50: #{tpu_custom_call.1} parent=1 // pred_check
      _
    $region51: #{tpu_custom_call.1} parent=1 // pred_check_branch
      %974 = sbr.rel (0) target = $region53
    $region52: #{tpu_custom_call.1} parent=1 // pred_region
      %976 = dma.done [#allocation4], 128
    $region53: #{tpu_custom_call.1} parent=1 // pred_fallthru
      _
    %977 = vsyncpa [#allocation3], 1
    %978 = vsyncpa [#allocation6], 1
    %979 = vsyncpa [#allocation9], 1
    %980 = vsyncpa [#allocation4], 1

</llo_original>
